<compile_context>
chip_gen: v6e
topology: v6e:2x2x1
jax: 0.10.0
libtpu: 0.0.40
codegen_flags: <defaults>
</compile_context>

<pallas_src>
import jax
import jax.numpy as jnp
from jax.experimental import pallas as pl
from jax.experimental.pallas import tpu as pltpu


def mlp_kernel(x_ref, w1_ref, b1_ref, w2_ref, b2_ref, w3_ref, b3_ref, o_ref):
    # x_ref: (block_b, F) -- batch on sublanes; weights are (in, out), biases (1, out).
    x = x_ref[...]
    # fc1 + relu : (B, F) @ (F, 12) -> (B, 12)
    h1 = jnp.dot(x, w1_ref[...], preferred_element_type=jnp.float32) + b1_ref[...]
    h1 = jnp.maximum(h1, 0.0)
    # fc2 + relu : (B, 12) @ (12, 8) -> (B, 8)
    h2 = jnp.dot(h1, w2_ref[...], preferred_element_type=jnp.float32) + b2_ref[...]
    h2 = jnp.maximum(h2, 0.0)
    # fc3 + sigmoid : (B, 8) @ (8, 1) -> (B, 1)
    z = jnp.dot(h2, w3_ref[...], preferred_element_type=jnp.float32) + b3_ref[...]
    o_ref[...] = jax.nn.sigmoid(z).astype(o_ref.dtype)


def _vmem_limit_bytes(block_b):
    # Worst case: 2 x-input buffers + 2 output buffers + ~3 live intermediates, all
    # lane-padded to 128 f32 lanes.  Clamp to a range that is safe on v5e/v6e (128 MiB
    # physical) and within the v7x per-TensorCore budget (64 MiB).
    est = block_b * 128 * 4 * 7 + (4 << 20)
    return int(min(max(est, 32 << 20), 48 << 20))


def mlp_forward(x, params, *, block_b=8192):
    """x: (B, n_features) f32 (batch-major, PyTorch-style).  Returns (B, 1) f32."""
    w1, b1, w2, b2, w3, b3 = params          # PyTorch layout: W (out, in), b (out,)
    B, F = x.shape

    # Tiny one-time layout plumbing on the (very small) parameters only.
    w1t, w2t, w3t = w1.T, w2.T, w3.T          # (in, out)
    b1r, b2r, b3r = b1.reshape(1, -1), b2.reshape(1, -1), b3.reshape(1, -1)

    if B <= block_b:
        block_b = B                            # single tile == full extent (always legal)
    else:
        # Sublane (second-minor) tiling constraint; when B > block_b the grid has >= 2
        # steps so both TensorCores get work on v7x.
        assert block_b % 8 == 0, "batch tile must be a multiple of 8 sublanes"
    num_tiles = pl.cdiv(B, block_b)            # ragged tail handled by Pallas block masking

    full = lambda a: pl.BlockSpec(a.shape, lambda i: (0, 0))   # VMEM-resident params

    param_bytes = sum(int(p.size) * 4 for p in (w1t, b1r, w2t, b2r, w3t, b3r))
    cost = pl.CostEstimate(
        flops=2 * B * (F * 12 + 12 * 8 + 8 * 1),
        transcendentals=B,                                    # sigmoid
        bytes_accessed=B * F * 4 + B * 4 + param_bytes,
    )

    out = pl.pallas_call(
        mlp_kernel,
        out_shape=jax.ShapeDtypeStruct((B, 1), jnp.float32),
        grid_spec=pltpu.PrefetchScalarGridSpec(
            num_scalar_prefetch=0,
            grid=(num_tiles,),
            in_specs=[
                pl.BlockSpec((block_b, F), lambda i: (i, 0)),  # x row-tile (no transpose)
                full(w1t), full(b1r),
                full(w2t), full(b2r),
                full(w3t), full(b3r),
            ],
            out_specs=pl.BlockSpec((block_b, 1), lambda i: (i, 0)),
        ),
        compiler_params=pltpu.CompilerParams(
            dimension_semantics=("parallel",),                 # shards grid across TCs on v7x
            vmem_limit_bytes=_vmem_limit_bytes(block_b),
        ),
        cost_estimate=cost,
    )(x, w1t, b1r, w2t, b2r, w3t, b3r)
    return out


def init_params(key, n_features):
    # PyTorch nn.Linear layout: W is (out, in), b is (out,); init U(-1/sqrt(fan_in), ...).
    dims = [(n_features, 12), (12, 8), (8, 1)]
    params = []
    for fan_in, fan_out in dims:
        key, kw, kb = jax.random.split(key, 3)
        bound = 1.0 / jnp.sqrt(fan_in)
        w = jax.random.uniform(kw, (fan_out, fan_in), jnp.float32, -bound, bound)
        b = jax.random.uniform(kb, (fan_out,), jnp.float32, -bound, bound)
        params += [w, b]
    return params


def reference_forward(x, params):
    w1, b1, w2, b2, w3, b3 = params
    h1 = jnp.maximum(x @ w1.T + b1, 0.0)
    h2 = jnp.maximum(h1 @ w2.T + b2, 0.0)
    return jax.nn.sigmoid(h2 @ w3.T + b3)


if __name__ == "__main__":
    key = jax.random.PRNGKey(0)
    n_features = 32
    kx1, kx2, kx3, kp = jax.random.split(key, 4)
    params = init_params(kp, n_features)

    # Case 1: tiny batch -> single tile covering the full extent.
    x1 = jax.random.normal(kx1, (16, n_features), jnp.float32)
    o1 = jax.block_until_ready(mlp_forward(x1, params))
    r1 = reference_forward(x1, params)
    assert o1.shape == (16, 1)
    assert jnp.allclose(o1, r1, atol=1e-5, rtol=1e-5), "mismatch (small batch)"

    # Case 2: multi-tile grid with a ragged last tile (OOB rows masked, no pad copy).
    x2 = jax.random.normal(kx2, (300, n_features), jnp.float32)
    o2 = jax.block_until_ready(mlp_forward(x2, params, block_b=128))
    r2 = reference_forward(x2, params)
    assert o2.shape == (300, 1)
    assert jnp.allclose(o2, r2, atol=1e-5, rtol=1e-5), "mismatch (tiled batch)"

    # Case 3: exercises the default large-tile production path (2 tiles, second partial).
    x3 = jax.random.normal(kx3, (9000, n_features), jnp.float32)
    o3 = jax.block_until_ready(mlp_forward(x3, params))
    r3 = reference_forward(x3, params)
    assert o3.shape == (9000, 1)
    assert jnp.allclose(o3, r3, atol=1e-5, rtol=1e-5), "mismatch (large batch)"

    # TODO(synk): optional bf16 storage of x for v5e (halves the bandwidth-bound input
    # stream); kept f32 here to match the reference tolerance exactly.
    print("KERNEL_OK")
</pallas_src>

<mosaic_0001>
module attributes {stable_mosaic.version = 11 : i64} {
  func.func @mlp_kernel(%arg0: i32, %arg1: memref<16x32xf32, #tpu.memory_space<vmem>>, %arg2: memref<32x12xf32, #tpu.memory_space<vmem>>, %arg3: memref<1x12xf32, #tpu.memory_space<vmem>>, %arg4: memref<12x8xf32, #tpu.memory_space<vmem>>, %arg5: memref<1x8xf32, #tpu.memory_space<vmem>>, %arg6: memref<8x1xf32, #tpu.memory_space<vmem>>, %arg7: memref<1x1xf32, #tpu.memory_space<vmem>>, %arg8: memref<16x1xf32, #tpu.memory_space<vmem>>) attributes {dimension_semantics = [#tpu.dimension_semantics<parallel>], iteration_bounds = array<i64: 1>, scalar_prefetch = 0 : i64, scratch_operands = 0 : i64, tpu.core_type = #tpu.core_type<tc>, window_params = [{transform_indices = @transform_0, window_bounds = array<i64: 16, 32>}, {pipeline_mode = #tpu.pipeline_mode<synchronous>, transform_indices = @transform_1, window_bounds = array<i64: 32, 12>}, {pipeline_mode = #tpu.pipeline_mode<synchronous>, transform_indices = @transform_2, window_bounds = array<i64: 1, 12>}, {pipeline_mode = #tpu.pipeline_mode<synchronous>, transform_indices = @transform_3, window_bounds = array<i64: 12, 8>}, {pipeline_mode = #tpu.pipeline_mode<synchronous>, transform_indices = @transform_4, window_bounds = array<i64: 1, 8>}, {pipeline_mode = #tpu.pipeline_mode<synchronous>, transform_indices = @transform_5, window_bounds = array<i64: 8, 1>}, {pipeline_mode = #tpu.pipeline_mode<synchronous>, transform_indices = @transform_6, window_bounds = array<i64: 1, 1>}, {transform_indices = @transform_7, window_bounds = array<i64: 16, 1>}]} {
    %c0 = arith.constant 0 : index
    %c0_0 = arith.constant 0 : index
    %0 = vector.load %arg1[%c0, %c0_0] : memref<16x32xf32, #tpu.memory_space<vmem>>, vector<16x32xf32>
    %c0_1 = arith.constant 0 : index
    %c0_2 = arith.constant 0 : index
    %1 = vector.load %arg2[%c0_1, %c0_2] : memref<32x12xf32, #tpu.memory_space<vmem>>, vector<32x12xf32>
    %cst = arith.constant dense<0.000000e+00> : vector<16x12xf32>
    %2 = tpu.matmul %0, %1, %cst {dimension_numbers = #tpu.dot_dimension_numbers<[1], [0], [0], [1], [0, 0, 1, 1], [], []>} : vector<16x32xf32>, vector<32x12xf32>, vector<16x12xf32> -> vector<16x12xf32>
    %c0_3 = arith.constant 0 : index
    %c0_4 = arith.constant 0 : index
    %3 = vector.load %arg3[%c0_3, %c0_4] : memref<1x12xf32, #tpu.memory_space<vmem>>, vector<1x12xf32>
    %4 = vector.broadcast %3 : vector<1x12xf32> to vector<16x12xf32>
    %5 = arith.addf %2, %4 : vector<16x12xf32>
    %cst_5 = arith.constant 0.000000e+00 : f32
    %6 = vector.broadcast %cst_5 : f32 to vector<16x12xf32>
    %7 = arith.maximumf %5, %6 : vector<16x12xf32>
    %c0_6 = arith.constant 0 : index
    %c0_7 = arith.constant 0 : index
    %8 = vector.load %arg4[%c0_6, %c0_7] : memref<12x8xf32, #tpu.memory_space<vmem>>, vector<12x8xf32>
    %cst_8 = arith.constant dense<0.000000e+00> : vector<16x8xf32>
    %9 = tpu.matmul %7, %8, %cst_8 {dimension_numbers = #tpu.dot_dimension_numbers<[1], [0], [0], [1], [0, 0, 1, 1], [], []>} : vector<16x12xf32>, vector<12x8xf32>, vector<16x8xf32> -> vector<16x8xf32>
    %c0_9 = arith.constant 0 : index
    %c0_10 = arith.constant 0 : index
    %10 = vector.load %arg5[%c0_9, %c0_10] : memref<1x8xf32, #tpu.memory_space<vmem>>, vector<1x8xf32>
    %11 = vector.broadcast %10 : vector<1x8xf32> to vector<16x8xf32>
    %12 = arith.addf %9, %11 : vector<16x8xf32>
    %cst_11 = arith.constant 0.000000e+00 : f32
    %13 = vector.broadcast %cst_11 : f32 to vector<16x8xf32>
    %14 = arith.maximumf %12, %13 : vector<16x8xf32>
    %c0_12 = arith.constant 0 : index
    %c0_13 = arith.constant 0 : index
    %15 = vector.load %arg6[%c0_12, %c0_13] : memref<8x1xf32, #tpu.memory_space<vmem>>, vector<8x1xf32>
    %cst_14 = arith.constant dense<0.000000e+00> : vector<16x1xf32>
    %16 = tpu.matmul %14, %15, %cst_14 {dimension_numbers = #tpu.dot_dimension_numbers<[1], [0], [0], [1], [0, 0, 1, 1], [], []>} : vector<16x8xf32>, vector<8x1xf32>, vector<16x1xf32> -> vector<16x1xf32>
    %c0_15 = arith.constant 0 : index
    %c0_16 = arith.constant 0 : index
    %17 = vector.load %arg7[%c0_15, %c0_16] : memref<1x1xf32, #tpu.memory_space<vmem>>, vector<1x1xf32>
    %18 = vector.broadcast %17 : vector<1x1xf32> to vector<16x1xf32>
    %19 = arith.addf %16, %18 : vector<16x1xf32>
    %20 = arith.negf %19 : vector<16x1xf32>
    %21 = math.exp %20 : vector<16x1xf32>
    %cst_17 = arith.constant 1.000000e+00 : f32
    %22 = vector.broadcast %cst_17 : f32 to vector<16x1xf32>
    %23 = arith.addf %22, %21 : vector<16x1xf32>
    %24 = arith.divf %22, %23 : vector<16x1xf32>
    %c0_18 = arith.constant 0 : index
    %c0_19 = arith.constant 0 : index
    %25 = vector.load %arg8[%c0_18, %c0_19] : memref<16x1xf32, #tpu.memory_space<vmem>>, vector<16x1xf32>
    tpu.vector_store %arg8[%c0_18, %c0_19], %24 {strides = array<i32>} : memref<16x1xf32, #tpu.memory_space<vmem>>, vector<16x1xf32>,
    return
  }
  func.func @transform_0(%arg0: i32) -> (i32, i32) {
    %c0_i32 = arith.constant 0 : i32
    %c0_i32_0 = arith.constant 0 : i32
    return %arg0, %c0_i32 : i32, i32
  }
  func.func @transform_1(%arg0: i32) -> (i32, i32) {
    %c0_i32 = arith.constant 0 : i32
    %c0_i32_0 = arith.constant 0 : i32
    %c0_i32_1 = arith.constant 0 : i32
    return %c0_i32, %c0_i32_0 : i32, i32
  }
  func.func @transform_2(%arg0: i32) -> (i32, i32) {
    %c0_i32 = arith.constant 0 : i32
    %c0_i32_0 = arith.constant 0 : i32
    %c0_i32_1 = arith.constant 0 : i32
    return %c0_i32, %c0_i32_0 : i32, i32
  }
  func.func @transform_3(%arg0: i32) -> (i32, i32) {
    %c0_i32 = arith.constant 0 : i32
    %c0_i32_0 = arith.constant 0 : i32
    %c0_i32_1 = arith.constant 0 : i32
    return %c0_i32, %c0_i32_0 : i32, i32
  }
  func.func @transform_4(%arg0: i32) -> (i32, i32) {
    %c0_i32 = arith.constant 0 : i32
    %c0_i32_0 = arith.constant 0 : i32
    %c0_i32_1 = arith.constant 0 : i32
    return %c0_i32, %c0_i32_0 : i32, i32
  }
  func.func @transform_5(%arg0: i32) -> (i32, i32) {
    %c0_i32 = arith.constant 0 : i32
    %c0_i32_0 = arith.constant 0 : i32
    %c0_i32_1 = arith.constant 0 : i32
    return %c0_i32, %c0_i32_0 : i32, i32
  }
  func.func @transform_6(%arg0: i32) -> (i32, i32) {
    %c0_i32 = arith.constant 0 : i32
    %c0_i32_0 = arith.constant 0 : i32
    %c0_i32_1 = arith.constant 0 : i32
    return %c0_i32, %c0_i32_0 : i32, i32
  }
  func.func @transform_7(%arg0: i32) -> (i32, i32) {
    %c0_i32 = arith.constant 0 : i32
    %c0_i32_0 = arith.constant 0 : i32
    return %arg0, %c0_i32 : i32, i32
  }
}

</mosaic_0001>

<llo_original>
// kernel: tpu_custom_call.1
$region0: #{tpu_custom_call.1}
  #allocation0 [shape = 'u32[]', space=smem, size = 0x4, offset = 0x4, fixed_abs, tag = 'smem constant byte address 0x4 - core index']
  #allocation1 [shape = 'u32[144,128]{1,0:T(1,128)}', space=vmem, size = 0x12000, scoped, tag = 'internal scratch']
  #allocation2 [shape = 'f32[1,1]{1,0:T(1,128)S(1)}', space=vmem, size = 0x200, scoped, tag = 'scoped memory for tpu_custom_call.1']
  %s0 = inlined_call_operand.vmem [shape: f32[16,32], index: 0, kind: input, shape index: {}]
  %s1 = inlined_call_operand.vmem [shape: f32[32,12], index: 1, kind: input, shape index: {}]
  %s2 = inlined_call_operand.vmem [shape: f32[1,12], index: 2, kind: input, shape index: {}]
  %s3 = inlined_call_operand.vmem [shape: f32[12,8], index: 3, kind: input, shape index: {}]
  %s4 = inlined_call_operand.vmem [shape: f32[1,8], index: 4, kind: input, shape index: {}]
  %s5 = inlined_call_operand.vmem [shape: f32[8,1], index: 5, kind: input, shape index: {}]
  %s6 = inlined_call_operand.<no memory space> [shape: f32[1,1], index: 6, kind: input, shape index: {}]
  %s7 = inlined_call_operand.vmem [shape: f32[16,1], index: 7, kind: output, shape index: {}]
  %s8 = sld [smem:[#allocation0]]
  $region38: #{tpu_custom_call.1} parent=0
    _
  %s10 = ssub.s32 1, %s8
  %s11 = scalar_select 0, %s10, %s8
  %v12 = vstv %s6
  %13 = vst [vmem:[#allocation2] sm:$0x1] %v12
  // Predicated region
  $region2: #{tpu_custom_call.1} parent=0 // pred_check
    _
  $region3: #{tpu_custom_call.1} parent=0 // pred_check_branch
    %15 = sbr.rel (0) target = $region5
  $region4: #{tpu_custom_call.1} parent=0 // pred_region
    _
  $region5: #{tpu_custom_call.1} parent=0 // pred_fallthru
    _
  // Predicated region
  $region6: #{tpu_custom_call.1} parent=0 // pred_check
    _
  $region7: #{tpu_custom_call.1} parent=0 // pred_check_branch
    %17 = sbr.rel (0) target = $region9
  $region8: #{tpu_custom_call.1} parent=0 // pred_region
    _
  $region9: #{tpu_custom_call.1} parent=0 // pred_fallthru
    _
  // Predicated region
  $region10: #{tpu_custom_call.1} parent=0 // pred_check
    _
  $region11: #{tpu_custom_call.1} parent=0 // pred_check_branch
    %19 = sbr.rel (0) target = $region13
  $region12: #{tpu_custom_call.1} parent=0 // pred_region
    _
  $region13: #{tpu_custom_call.1} parent=0 // pred_fallthru
    _
  // Predicated region
  $region14: #{tpu_custom_call.1} parent=0 // pred_check
    _
  $region15: #{tpu_custom_call.1} parent=0 // pred_check_branch
    %21 = sbr.rel (0) target = $region17
  $region16: #{tpu_custom_call.1} parent=0 // pred_region
    _
  $region17: #{tpu_custom_call.1} parent=0 // pred_fallthru
    _
  // Predicated region
  $region18: #{tpu_custom_call.1} parent=0 // pred_check
    _
  $region19: #{tpu_custom_call.1} parent=0 // pred_check_branch
    %23 = sbr.rel (0) target = $region21
  $region20: #{tpu_custom_call.1} parent=0 // pred_region
    _
  $region21: #{tpu_custom_call.1} parent=0 // pred_fallthru
    _
  // Predicated region
  $region22: #{tpu_custom_call.1} parent=0 // pred_check
    _
  $region23: #{tpu_custom_call.1} parent=0 // pred_check_branch
    %25 = sbr.rel (0) target = $region25
  $region24: #{tpu_custom_call.1} parent=0 // pred_region
    _
  $region25: #{tpu_custom_call.1} parent=0 // pred_fallthru
    _
  // Predicated region
  $region26: #{tpu_custom_call.1} parent=0 // pred_check
    _
  $region27: #{tpu_custom_call.1} parent=0 // pred_check_branch
    %27 = sbr.rel (0) target = $region29
  $region28: #{tpu_custom_call.1} parent=0 // pred_region
    _
  $region29: #{tpu_custom_call.1} parent=0 // pred_fallthru
    _
  %v28 = vld [vmem:[%s0] sm:$0xff]
  %v29 = vld [vmem:[%s0 + $0x8] sm:$0xff]
  %v30 = vld [vmem:[%s1] sm:$0xff]
  %v31 = vld [vmem:[%s1 + $0x8] sm:$0xff]
  %v32 = vld [vmem:[%s1 + $0x10] sm:$0xff]
  %v33 = vld [vmem:[%s1 + $0x18] sm:$0xff]
  %v34 = vld [vmem:[%s2] sm:$0x1]
  %v36 = vlaneseq
  %v37 = vshrl.u32 %v36, 7
  %v38 = vsub.s32 0, %v37
  %v39 = vrot.slane %v34, %v38
  %vm41 = vcmask 261120
  %v43 = vsel %vm41, %v28, 0
  %v46 = vsel %vm41, %v29, 0
  %48 = vmatprep.subr.mxu0 0.0
  %49 = vmatpush1.msra.mxu0 0.0
  %50 = vmatprep.subr.mxu0 0.0
  %51 = vmatpush1.msra.mxu0 0.0
  %52 = vmatprep.subr.mxu0 0.0
  %53 = vmatpush1.msra.mxu0 0.0
  %54 = vmatprep.subr.mxu0 0.0
  %55 = vmatpush1.msra.mxu0 0.0
  %56 = vmatprep.subr.mxu0 0.0
  %57 = vmatpush1.msra.mxu0 0.0
  %58 = vmatprep.subr.mxu0 0.0
  %59 = vmatpush1.msra.mxu0 0.0
  %60 = vmatprep.subr.mxu0 0.0
  %61 = vmatpush1.msra.mxu0 0.0
  %62 = vmatprep.subr.mxu0 0.0
  %63 = vmatpush1.msra.mxu0 0.0
  %64 = vmatprep.subr.mxu0 0.0
  %65 = vmatpush1.msra.mxu0 0.0
  %66 = vmatprep.subr.mxu0 0.0
  %67 = vmatpush1.msra.mxu0 0.0
  %68 = vmatprep.subr.mxu0 0.0
  %69 = vmatpush1.msra.mxu0 0.0
  %70 = vmatprep.subr.mxu0 0.0
  %71 = vmatpush1.msra.mxu0 0.0
  %72 = vmatprep.subr.mxu0 0.0
  %73 = vmatpush1.msra.mxu0 %v33
  %74 = vmatprep.subr.mxu0 0.0
  %75 = vmatpush1.msra.mxu0 %v32
  %76 = vmatprep.subr.mxu0 0.0
  %77 = vmatpush1.msra.mxu0 %v31
  %78 = vmatprep.subr.mxu0 0.0
  %79 = vmatpush1.msra.mxu0 %v30
  %80 = vmatprep.subr.mxu0 0.0
  %81 = vmatpush2.msra.mxu0 0.0
  %82 = vmatprep.subr.mxu0 0.0
  %83 = vmatpush2.msra.mxu0 0.0
  %84 = vmatprep.subr.mxu0 0.0
  %85 = vmatpush2.msra.mxu0 0.0
  %86 = vmatprep.subr.mxu0 0.0
  %87 = vmatpush2.msra.mxu0 0.0
  %88 = vmatprep.subr.mxu0 0.0
  %89 = vmatpush2.msra.mxu0 0.0
  %90 = vmatprep.subr.mxu0 0.0
  %91 = vmatpush2.msra.mxu0 0.0
  %92 = vmatprep.subr.mxu0 0.0
  %93 = vmatpush2.msra.mxu0 0.0
  %94 = vmatprep.subr.mxu0 0.0
  %95 = vmatpush2.msra.mxu0 0.0
  %96 = vmatprep.subr.mxu0 0.0
  %97 = vmatpush2.msra.mxu0 0.0
  %98 = vmatprep.subr.mxu0 0.0
  %99 = vmatpush2.msra.mxu0 0.0
  %100 = vmatprep.subr.mxu0 0.0
  %101 = vmatpush2.msra.mxu0 0.0
  %102 = vmatprep.subr.mxu0 0.0
  %103 = vmatpush2.msra.mxu0 0.0
  %104 = vmatprep.subr.mxu0 0.0
  %105 = vmatpush2.msra.mxu0 0.0
  %106 = vmatprep.subr.mxu0 0.0
  %107 = vmatpush2.msra.mxu0 0.0
  %108 = vmatprep.subr.mxu0 0.0
  %109 = vmatpush2.msra.mxu0 0.0
  %110 = vmatprep.subr.mxu0 0.0
  %111 = vmatpush2.msra.mxu0 0.0
  %112 = vmatprep.mubr.f32.mxu0 0.0
  %113 = vmatmul.mubr.f32.gmra.mxu0 %v43
  %v114 = vpop.f32.mrf.mxu0
  %v115 = vadd.f32 %v39, %v114
  %v116 = vpop.f32.mrf.mxu0
  %117 = vmatprep.mubr.f32.mxu0 0.0
  %118 = vmatmul.mubr.f32.gmra.mxu0 %v46
  %v119 = vpop.f32.mrf.mxu0
  %v120 = vadd.f32 %v39, %v119
  %v121 = vpop.f32.mrf.mxu0
  %122 = vdwg.mxu0
  %v123 = vmax.f32 %v115, 0.0
  %v124 = vmax.f32 %v120, 0.0
  %v125 = vld [vmem:[%s3] sm:$0xff]
  %v126 = vld [vmem:[%s3 + $0x8] sm:$0xf]
  %v127 = vld [vmem:[%s4] sm:$0x1]
  %v129 = vlaneseq
  %v130 = vshrl.u32 %v129, 7
  %v131 = vsub.s32 0, %v130
  %v132 = vrot.slane %v127, %v131
  %vm134 = vcmask 97280
  %v136 = vsel %vm134, %v123, 0
  %v139 = vsel %vm134, %v124, 0
  %vm141 = vcmask 1043456
  %v143 = vsel %vm141, %v126, 0
  %145 = vmatprep.subr.mxu0 0.0
  %146 = vmatpush1.msra.mxu0 0.0
  %147 = vmatprep.subr.mxu0 0.0
  %148 = vmatpush1.msra.mxu0 0.0
  %149 = vmatprep.subr.mxu0 0.0
  %150 = vmatpush1.msra.mxu0 0.0
  %151 = vmatprep.subr.mxu0 0.0
  %152 = vmatpush1.msra.mxu0 0.0
  %153 = vmatprep.subr.mxu0 0.0
  %154 = vmatpush1.msra.mxu0 0.0
  %155 = vmatprep.subr.mxu0 0.0
  %156 = vmatpush1.msra.mxu0 0.0
  %157 = vmatprep.subr.mxu0 0.0
  %158 = vmatpush1.msra.mxu0 0.0
  %159 = vmatprep.subr.mxu0 0.0
  %160 = vmatpush1.msra.mxu0 0.0
  %161 = vmatprep.subr.mxu0 0.0
  %162 = vmatpush1.msra.mxu0 0.0
  %163 = vmatprep.subr.mxu0 0.0
  %164 = vmatpush1.msra.mxu0 0.0
  %165 = vmatprep.subr.mxu0 0.0
  %166 = vmatpush1.msra.mxu0 0.0
  %167 = vmatprep.subr.mxu0 0.0
  %168 = vmatpush1.msra.mxu0 0.0
  %169 = vmatprep.subr.mxu0 0.0
  %170 = vmatpush1.msra.mxu0 0.0
  %171 = vmatprep.subr.mxu0 0.0
  %172 = vmatpush1.msra.mxu0 0.0
  %173 = vmatprep.subr.mxu0 0.0
  %174 = vmatpush1.msra.mxu0 %v143
  %175 = vmatprep.subr.mxu0 0.0
  %176 = vmatpush1.msra.mxu0 %v125
  %177 = vmatprep.subr.mxu0 0.0
  %178 = vmatpush2.msra.mxu0 0.0
  %179 = vmatprep.subr.mxu0 0.0
  %180 = vmatpush2.msra.mxu0 0.0
  %181 = vmatprep.subr.mxu0 0.0
  %182 = vmatpush2.msra.mxu0 0.0
  %183 = vmatprep.subr.mxu0 0.0
  %184 = vmatpush2.msra.mxu0 0.0
  %185 = vmatprep.subr.mxu0 0.0
  %186 = vmatpush2.msra.mxu0 0.0
  %187 = vmatprep.subr.mxu0 0.0
  %188 = vmatpush2.msra.mxu0 0.0
  %189 = vmatprep.subr.mxu0 0.0
  %190 = vmatpush2.msra.mxu0 0.0
  %191 = vmatprep.subr.mxu0 0.0
  %192 = vmatpush2.msra.mxu0 0.0
  %193 = vmatprep.subr.mxu0 0.0
  %194 = vmatpush2.msra.mxu0 0.0
  %195 = vmatprep.subr.mxu0 0.0
  %196 = vmatpush2.msra.mxu0 0.0
  %197 = vmatprep.subr.mxu0 0.0
  %198 = vmatpush2.msra.mxu0 0.0
  %199 = vmatprep.subr.mxu0 0.0
  %200 = vmatpush2.msra.mxu0 0.0
  %201 = vmatprep.subr.mxu0 0.0
  %202 = vmatpush2.msra.mxu0 0.0
  %203 = vmatprep.subr.mxu0 0.0
  %204 = vmatpush2.msra.mxu0 0.0
  %205 = vmatprep.subr.mxu0 0.0
  %206 = vmatpush2.msra.mxu0 0.0
  %207 = vmatprep.subr.mxu0 0.0
  %208 = vmatpush2.msra.mxu0 0.0
  %209 = vmatprep.mubr.f32.mxu0 0.0
  %210 = vmatmul.mubr.f32.gmra.mxu0 %v136
  %v211 = vpop.f32.mrf.mxu0
  %v212 = vadd.f32 %v132, %v211
  %v213 = vpop.f32.mrf.mxu0
  %214 = vmatprep.mubr.f32.mxu0 0.0
  %215 = vmatmul.mubr.f32.gmra.mxu0 %v139
  %v216 = vpop.f32.mrf.mxu0
  %v217 = vadd.f32 %v132, %v216
  %v218 = vpop.f32.mrf.mxu0
  %219 = vdwg.mxu0
  %v220 = vmax.f32 %v212, 0.0
  %v221 = vmax.f32 %v217, 0.0
  %v222 = vld [vmem:[%s5] sm:$0xff]
  %v223 = vld [vmem:[#allocation2] sm:$0x1]
  %v225 = vlaneseq
  %v226 = vshrl.u32 %v225, 7
  %v227 = vsub.s32 0, %v226
  %v228 = vrot.slane %v223, %v227
  %vm230 = vcmask 64512
  %v232 = vsel %vm230, %v220, 0
  %v235 = vsel %vm230, %v221, 0
  %237 = vmatprep.subr.mxu0 0.0
  %238 = vmatpush1.msra.mxu0 0.0
  %239 = vmatprep.subr.mxu0 0.0
  %240 = vmatpush1.msra.mxu0 0.0
  %241 = vmatprep.subr.mxu0 0.0
  %242 = vmatpush1.msra.mxu0 0.0
  %243 = vmatprep.subr.mxu0 0.0
  %244 = vmatpush1.msra.mxu0 0.0
  %245 = vmatprep.subr.mxu0 0.0
  %246 = vmatpush1.msra.mxu0 0.0
  %247 = vmatprep.subr.mxu0 0.0
  %248 = vmatpush1.msra.mxu0 0.0
  %249 = vmatprep.subr.mxu0 0.0
  %250 = vmatpush1.msra.mxu0 0.0
  %251 = vmatprep.subr.mxu0 0.0
  %252 = vmatpush1.msra.mxu0 0.0
  %253 = vmatprep.subr.mxu0 0.0
  %254 = vmatpush1.msra.mxu0 0.0
  %255 = vmatprep.subr.mxu0 0.0
  %256 = vmatpush1.msra.mxu0 0.0
  %257 = vmatprep.subr.mxu0 0.0
  %258 = vmatpush1.msra.mxu0 0.0
  %259 = vmatprep.subr.mxu0 0.0
  %260 = vmatpush1.msra.mxu0 0.0
  %261 = vmatprep.subr.mxu0 0.0
  %262 = vmatpush1.msra.mxu0 0.0
  %263 = vmatprep.subr.mxu0 0.0
  %264 = vmatpush1.msra.mxu0 0.0
  %265 = vmatprep.subr.mxu0 0.0
  %266 = vmatpush1.msra.mxu0 0.0
  %267 = vmatprep.subr.mxu0 0.0
  %268 = vmatpush1.msra.mxu0 %v222
  %269 = vmatprep.subr.mxu0 0.0
  %270 = vmatpush2.msra.mxu0 0.0
  %271 = vmatprep.subr.mxu0 0.0
  %272 = vmatpush2.msra.mxu0 0.0
  %273 = vmatprep.subr.mxu0 0.0
  %274 = vmatpush2.msra.mxu0 0.0
  %275 = vmatprep.subr.mxu0 0.0
  %276 = vmatpush2.msra.mxu0 0.0
  %277 = vmatprep.subr.mxu0 0.0
  %278 = vmatpush2.msra.mxu0 0.0
  %279 = vmatprep.subr.mxu0 0.0
  %280 = vmatpush2.msra.mxu0 0.0
  %281 = vmatprep.subr.mxu0 0.0
  %282 = vmatpush2.msra.mxu0 0.0
  %283 = vmatprep.subr.mxu0 0.0
  %284 = vmatpush2.msra.mxu0 0.0
  %285 = vmatprep.subr.mxu0 0.0
  %286 = vmatpush2.msra.mxu0 0.0
  %287 = vmatprep.subr.mxu0 0.0
  %288 = vmatpush2.msra.mxu0 0.0
  %289 = vmatprep.subr.mxu0 0.0
  %290 = vmatpush2.msra.mxu0 0.0
  %291 = vmatprep.subr.mxu0 0.0
  %292 = vmatpush2.msra.mxu0 0.0
  %293 = vmatprep.subr.mxu0 0.0
  %294 = vmatpush2.msra.mxu0 0.0
  %295 = vmatprep.subr.mxu0 0.0
  %296 = vmatpush2.msra.mxu0 0.0
  %297 = vmatprep.subr.mxu0 0.0
  %298 = vmatpush2.msra.mxu0 0.0
  %299 = vmatprep.subr.mxu0 0.0
  %300 = vmatpush2.msra.mxu0 0.0
  %301 = vmatprep.mubr.f32.mxu0 0.0
  %302 = vmatmul.mubr.f32.gmra.mxu0 %v232
  %v303 = vpop.f32.mrf.mxu0
  %v304 = vadd.f32 %v228, %v303
  %v305 = vpop.f32.mrf.mxu0
  %306 = vmatprep.mubr.f32.mxu0 0.0
  %307 = vmatmul.mubr.f32.gmra.mxu0 %v235
  %v308 = vpop.f32.mrf.mxu0
  %v309 = vadd.f32 %v228, %v308
  %v310 = vpop.f32.mrf.mxu0
  %311 = vdwg.mxu0
  %v312 = vxor.u32 %v304, 2147483648
  %v313 = vxor.u32 %v309, 2147483648
  %v314 = vmul.f32 %v312, 1.442695
  %v315 = vpow.pop %v314
  %v316 = vmul.f32 %v313, 1.442695
  %v317 = vpow.pop %v316
  %v318 = vadd.f32 %v315, 1.0
  %v319 = vadd.f32 %v317, 1.0
  %v320 = vrcp.pop %v318
  %v321 = vmul.f32 1.0, %v320
  %v322 = vrcp.pop %v319
  %v323 = vmul.f32 1.0, %v322
  %vm324 = vcmask 7168
  %325 = vst.msk [vmem:[%s7] sm:$0xff] %vm324, %v321
  %326 = vst.msk [vmem:[%s7 + $0x8] sm:$0xff] %vm324, %v323
  // Predicated region
  $region30: #{tpu_custom_call.1} parent=0 // pred_check
    _
  $region31: #{tpu_custom_call.1} parent=0 // pred_check_branch
    %328 = sbr.rel (0) target = $region33
  $region32: #{tpu_custom_call.1} parent=0 // pred_region
    _
  $region33: #{tpu_custom_call.1} parent=0 // pred_fallthru
    _
  // Predicated region
  $region34: #{tpu_custom_call.1} parent=0 // pred_check
    _
  $region35: #{tpu_custom_call.1} parent=0 // pred_check_branch
    %330 = sbr.rel (0) target = $region37
  $region36: #{tpu_custom_call.1} parent=0 // pred_region
    _
  $region37: #{tpu_custom_call.1} parent=0 // pred_fallthru
    _

</llo_original>
